<compile_context>
chip_gen: v7x
topology: tpu7x:2x2x1
jax: 0.10.0
libtpu: 0.0.40
codegen_flags: <defaults>
</compile_context>

<pallas_src>
import jax
import jax.numpy as jnp
from jax.experimental import pallas as pl
from jax.experimental.pallas import tpu as pltpu

NUM_DIGITS = 10
NUM_HIDDEN = 256
NUM_PIXELS = 784
NUM_STYLE = 50
DIGIT_TEMP = 0.66
INV_TEMP = 1.0 / DIGIT_TEMP

PIX_PAD = 896          # 7 * 128 : lane-aligned K for the dominant matmul
FUSED = 128            # fused post-hidden width: [logits | mean | log_std | pad]
NOISE_W = 128          # packed noise slab width: [gumbel(10) | eps(50) | pad]
OUT_W = 256            # packed lane-dense output slab width

# column layout inside the fused [*, 128] weights / bias
_F_LOG = slice(0, NUM_DIGITS)                                        # 0:10
_F_MEAN = slice(NUM_DIGITS, NUM_DIGITS + NUM_STYLE)                  # 10:60
_F_STD = slice(NUM_DIGITS + NUM_STYLE, NUM_DIGITS + 2 * NUM_STYLE)   # 60:110

# column layout of the packed noise slab
_N_GUM = slice(0, NUM_DIGITS)                                        # 0:10
_N_EPS = slice(NUM_DIGITS, NUM_DIGITS + NUM_STYLE)                   # 10:60

# column layout of the packed output slab
_O_LOG = slice(0, 10)
_O_DIG = slice(10, 20)
_O_MEAN = slice(20, 70)
_O_STD = slice(70, 120)
_O_STY = slice(120, 170)
_O_USED = 170


def encoder_kernel(x_ref, w1_ref, b1_ref, wh_ref, wd_ref, bf_ref,
                   noise_ref, out_ref):
    # enc_hidden: Linear(784 -> 256) + ReLU  (bf16 operands, f32 accumulation)
    h = jnp.dot(x_ref[...], w1_ref[...], preferred_element_type=jnp.float32)
    h = jnp.maximum(h + b1_ref[...], 0.0)
    hb = h.astype(jnp.bfloat16)

    # fused [logits | mean_h | logstd_h] = h @ [w2 | wm_h | ws_h] + [b2|bm|bs]
    hf = jnp.dot(hb, wh_ref[...], preferred_element_type=jnp.float32) + bf_ref[...]

    noise = noise_ref[...]
    gumbel = noise[:, _N_GUM]
    eps = noise[:, _N_EPS]

    # q.concrete(...): Gumbel-softmax sample with temperature 0.66
    logits = hf[:, _F_LOG]
    z = (logits + gumbel) * INV_TEMP
    z = z - jnp.max(z, axis=-1, keepdims=True)
    ez = jnp.exp(z)
    digits = ez * pl.reciprocal(jnp.sum(ez, axis=-1, keepdims=True), approx=True)

    # digit contribution of cat([digits, hiddens]):  digits @ [0 | wm_d | ws_d]
    df = jnp.dot(digits.astype(jnp.bfloat16), wd_ref[...],
                 preferred_element_type=jnp.float32)
    comb = hf + df
    mean = comb[:, _F_MEAN]
    std = jnp.exp(comb[:, _F_STD])
    # q.normal(...): reparameterized Normal sample
    styles = mean + std * eps

    tm = logits.shape[0]
    out_ref[...] = jnp.concatenate(
        [logits, digits, mean, std, styles,
         jnp.zeros((tm, OUT_W - _O_USED), jnp.float32)], axis=-1)


def _round_up(v, m):
    return (v + m - 1) // m * m


def _prepare(x, params):
    """Pad pixels to 896, fuse the post-hidden weights, cast matmul weights to bf16."""
    n = x.shape[0]
    xp = jnp.zeros((n, PIX_PAD), jnp.float32).at[:, :NUM_PIXELS].set(x)
    w1 = jnp.zeros((PIX_PAD, NUM_HIDDEN), jnp.float32).at[:NUM_PIXELS].set(params["w1"])
    b1 = params["b1"].reshape(1, NUM_HIDDEN).astype(jnp.float32)

    wh = jnp.zeros((NUM_HIDDEN, FUSED), jnp.float32)
    wh = wh.at[:, _F_LOG].set(params["w2"])
    wh = wh.at[:, _F_MEAN].set(params["wm_h"])
    wh = wh.at[:, _F_STD].set(params["ws_h"])

    wd = jnp.zeros((NUM_DIGITS, FUSED), jnp.float32)
    wd = wd.at[:, _F_MEAN].set(params["wm_d"])
    wd = wd.at[:, _F_STD].set(params["ws_d"])

    bf = jnp.zeros((1, FUSED), jnp.float32)
    bf = bf.at[:, _F_LOG].set(params["b2"])
    bf = bf.at[:, _F_MEAN].set(params["bm"])
    bf = bf.at[:, _F_STD].set(params["bs"])

    return (xp.astype(jnp.bfloat16), w1.astype(jnp.bfloat16), b1,
            wh.astype(jnp.bfloat16), wd.astype(jnp.bfloat16), bf)


def _pack_noise(gumbel, eps):
    n = gumbel.shape[0]
    noise = jnp.zeros((n, NOISE_W), jnp.float32)
    noise = noise.at[:, _N_GUM].set(gumbel)
    noise = noise.at[:, _N_EPS].set(eps)
    return noise


def encoder_forward(x, params, gumbel, eps, *, max_rows_per_tile=1024):
    n = x.shape[0]
    xp, w1, b1, wh, wd, bf = _prepare(x, params)
    noise = _pack_noise(gumbel, eps)

    # Row tile: multiple of 16 (bf16 sublane packing), capped for v7x VMEM headroom.
    tm = min(max_rows_per_tile, _round_up(n, 16))
    n_pad = _round_up(n, tm)
    if n_pad != n:
        pad = n_pad - n
        xp = jnp.pad(xp, ((0, pad), (0, 0)))
        noise = jnp.pad(noise, ((0, pad), (0, 0)))

    row = lambda i: (i, 0)
    full = lambda i: (0, 0)

    out = pl.pallas_call(
        encoder_kernel,
        out_shape=jax.ShapeDtypeStruct((n_pad, OUT_W), jnp.float32),
        grid=(n_pad // tm,),
        in_specs=[
            pl.BlockSpec((tm, PIX_PAD), row),            # x tile
            pl.BlockSpec((PIX_PAD, NUM_HIDDEN), full),   # w1
            pl.BlockSpec((1, NUM_HIDDEN), full),         # b1
            pl.BlockSpec((NUM_HIDDEN, FUSED), full),     # fused hidden weight
            pl.BlockSpec((NUM_DIGITS, FUSED), full),     # fused digit weight
            pl.BlockSpec((1, FUSED), full),              # fused bias
            pl.BlockSpec((tm, NOISE_W), row),            # packed [gumbel|eps] noise
        ],
        out_specs=pl.BlockSpec((tm, OUT_W), row),
        compiler_params=pltpu.CompilerParams(
            dimension_semantics=("parallel",)),
    )(xp, w1, b1, wh, wd, bf, noise)

    return (out[:n, _O_LOG], out[:n, _O_DIG], out[:n, _O_MEAN],
            out[:n, _O_STD], out[:n, _O_STY])


def init_params(key):
    ks = jax.random.split(key, 10)
    scale = 0.02
    return {
        # stored as [in, out] (i.e. already transposed vs. torch's [out, in])
        "w1":   scale * jax.random.normal(ks[0], (NUM_PIXELS, NUM_HIDDEN), jnp.float32),
        "b1":   scale * jax.random.normal(ks[1], (1, NUM_HIDDEN), jnp.float32),
        "w2":   scale * jax.random.normal(ks[2], (NUM_HIDDEN, NUM_DIGITS), jnp.float32),
        "b2":   scale * jax.random.normal(ks[3], (1, NUM_DIGITS), jnp.float32),
        "wm_d": scale * jax.random.normal(ks[4], (NUM_DIGITS, NUM_STYLE), jnp.float32),
        "wm_h": scale * jax.random.normal(ks[5], (NUM_HIDDEN, NUM_STYLE), jnp.float32),
        "bm":   scale * jax.random.normal(ks[6], (1, NUM_STYLE), jnp.float32),
        "ws_d": scale * jax.random.normal(ks[7], (NUM_DIGITS, NUM_STYLE), jnp.float32),
        "ws_h": scale * jax.random.normal(ks[8], (NUM_HIDDEN, NUM_STYLE), jnp.float32),
        "bs":   scale * jax.random.normal(ks[9], (1, NUM_STYLE), jnp.float32),
    }


def reference_forward(x, params, gumbel, eps):
    """Pure-JAX reference mirroring the kernel's bf16/f32 mixed precision."""
    xp, w1, b1, wh, wd, bf = _prepare(x, params)
    h = jnp.maximum(
        jnp.dot(xp, w1, preferred_element_type=jnp.float32) + b1, 0.0)
    hf = jnp.dot(h.astype(jnp.bfloat16), wh,
                 preferred_element_type=jnp.float32) + bf
    logits = hf[:, _F_LOG]
    digits = jax.nn.softmax((logits + gumbel) * INV_TEMP, axis=-1)
    df = jnp.dot(digits.astype(jnp.bfloat16), wd,
                 preferred_element_type=jnp.float32)
    comb = hf + df
    mean = comb[:, _F_MEAN]
    std = jnp.exp(comb[:, _F_STD])
    return logits, digits, mean, std, mean + std * eps


if __name__ == "__main__":
    key = jax.random.PRNGKey(0)
    k_param, k_img, k_gum, k_eps = jax.random.split(key, 4)

    num_samples, batch = 2, 8                     # @expand_inputs: [S, B, ...]
    n = num_samples * batch
    images = jax.random.uniform(k_img, (num_samples, batch, NUM_PIXELS), jnp.float32)
    x = images.reshape(n, NUM_PIXELS)

    params = init_params(k_param)

    # Gumbel noise for the Concrete sample; standard normal for the Normal sample.
    u = jax.random.uniform(k_gum, (n, NUM_DIGITS), jnp.float32, 1e-6, 1.0 - 1e-6)
    gumbel = -jnp.log(-jnp.log(u))
    eps = jax.random.normal(k_eps, (n, NUM_STYLE), jnp.float32)

    outs = encoder_forward(x, params, gumbel, eps)
    outs = jax.block_until_ready(outs)

    refs = reference_forward(x, params, gumbel, eps)
    for o, r in zip(outs, refs):
        assert o.shape == r.shape
        assert bool(jnp.allclose(o, r, atol=2e-3, rtol=2e-2))

    print("KERNEL_OK")
</pallas_src>

<mosaic_0001>
module attributes {stable_mosaic.version = 11 : i64} {
  func.func @encoder_kernel(%arg0: i32, %arg1: memref<16x896xbf16, #tpu.memory_space<vmem>>, %arg2: memref<896x256xbf16, #tpu.memory_space<vmem>>, %arg3: memref<1x256xf32, #tpu.memory_space<vmem>>, %arg4: memref<256x128xbf16, #tpu.memory_space<vmem>>, %arg5: memref<10x128xbf16, #tpu.memory_space<vmem>>, %arg6: memref<1x128xf32, #tpu.memory_space<vmem>>, %arg7: memref<16x128xf32, #tpu.memory_space<vmem>>, %arg8: memref<16x256xf32, #tpu.memory_space<vmem>>) attributes {dimension_semantics = [#tpu.dimension_semantics<parallel>], iteration_bounds = array<i64: 1>, scalar_prefetch = 0 : i64, scratch_operands = 0 : i64, tpu.core_type = #tpu.core_type<tc>, window_params = [{transform_indices = @transform_0, window_bounds = array<i64: 16, 896>}, {pipeline_mode = #tpu.pipeline_mode<synchronous>, transform_indices = @transform_1, window_bounds = array<i64: 896, 256>}, {pipeline_mode = #tpu.pipeline_mode<synchronous>, transform_indices = @transform_2, window_bounds = array<i64: 1, 256>}, {pipeline_mode = #tpu.pipeline_mode<synchronous>, transform_indices = @transform_3, window_bounds = array<i64: 256, 128>}, {pipeline_mode = #tpu.pipeline_mode<synchronous>, transform_indices = @transform_4, window_bounds = array<i64: 10, 128>}, {pipeline_mode = #tpu.pipeline_mode<synchronous>, transform_indices = @transform_5, window_bounds = array<i64: 1, 128>}, {transform_indices = @transform_6, window_bounds = array<i64: 16, 128>}, {transform_indices = @transform_7, window_bounds = array<i64: 16, 256>}]} {
    %c0 = arith.constant 0 : index
    %c0_0 = arith.constant 0 : index
    %0 = vector.load %arg1[%c0, %c0_0] : memref<16x896xbf16, #tpu.memory_space<vmem>>, vector<16x896xbf16>
    %c0_1 = arith.constant 0 : index
    %c0_2 = arith.constant 0 : index
    %1 = vector.load %arg2[%c0_1, %c0_2] : memref<896x256xbf16, #tpu.memory_space<vmem>>, vector<896x256xbf16>
    %cst = arith.constant dense<0.000000e+00> : vector<16x256xf32>
    %2 = tpu.matmul %0, %1, %cst {dimension_numbers = #tpu.dot_dimension_numbers<[1], [0], [0], [1], [0, 0, 1, 1], [], []>} : vector<16x896xbf16>, vector<896x256xbf16>, vector<16x256xf32> -> vector<16x256xf32>
    %c0_3 = arith.constant 0 : index
    %c0_4 = arith.constant 0 : index
    %3 = vector.load %arg3[%c0_3, %c0_4] : memref<1x256xf32, #tpu.memory_space<vmem>>, vector<1x256xf32>
    %4 = vector.broadcast %3 : vector<1x256xf32> to vector<16x256xf32>
    %5 = arith.addf %2, %4 : vector<16x256xf32>
    %cst_5 = arith.constant 0.000000e+00 : f32
    %6 = vector.broadcast %cst_5 : f32 to vector<16x256xf32>
    %7 = arith.maximumf %5, %6 : vector<16x256xf32>
    %8 = arith.truncf %7 : vector<16x256xf32> to vector<16x256xbf16>
    %c0_6 = arith.constant 0 : index
    %c0_7 = arith.constant 0 : index
    %9 = vector.load %arg4[%c0_6, %c0_7] : memref<256x128xbf16, #tpu.memory_space<vmem>>, vector<256x128xbf16>
    %cst_8 = arith.constant dense<0.000000e+00> : vector<16x128xf32>
    %10 = tpu.matmul %8, %9, %cst_8 {dimension_numbers = #tpu.dot_dimension_numbers<[1], [0], [0], [1], [0, 0, 1, 1], [], []>} : vector<16x256xbf16>, vector<256x128xbf16>, vector<16x128xf32> -> vector<16x128xf32>
    %c0_9 = arith.constant 0 : index
    %c0_10 = arith.constant 0 : index
    %11 = vector.load %arg6[%c0_9, %c0_10] : memref<1x128xf32, #tpu.memory_space<vmem>>, vector<1x128xf32>
    %12 = vector.broadcast %11 : vector<1x128xf32> to vector<16x128xf32>
    %13 = arith.addf %10, %12 : vector<16x128xf32>
    %c0_11 = arith.constant 0 : index
    %c0_12 = arith.constant 0 : index
    %14 = vector.load %arg7[%c0_11, %c0_12] : memref<16x128xf32, #tpu.memory_space<vmem>>, vector<16x128xf32>
    %15 = vector.extract_strided_slice %14 {offsets = [0, 0], sizes = [16, 10], strides = [1, 1]} : vector<16x128xf32> to vector<16x10xf32>
    %16 = vector.extract_strided_slice %14 {offsets = [0, 10], sizes = [16, 50], strides = [1, 1]} : vector<16x128xf32> to vector<16x50xf32>
    %17 = vector.extract_strided_slice %13 {offsets = [0, 0], sizes = [16, 10], strides = [1, 1]} : vector<16x128xf32> to vector<16x10xf32>
    %18 = arith.addf %17, %15 : vector<16x10xf32>
    %cst_13 = arith.constant 1.5151515 : f32
    %19 = vector.broadcast %cst_13 : f32 to vector<16x10xf32>
    %20 = arith.mulf %18, %19 : vector<16x10xf32>
    %cst_14 = arith.constant dense<0xFF800000> : vector<16xf32>
    %21 = vector.multi_reduction <maximumf>, %20, %cst_14 [1] : vector<16x10xf32> to vector<16xf32>
    %22 = vector.shape_cast %21 : vector<16xf32> to vector<16x1xf32>
    %23 = vector.broadcast %22 : vector<16x1xf32> to vector<16x10xf32>
    %24 = arith.subf %20, %23 : vector<16x10xf32>
    %25 = math.exp %24 : vector<16x10xf32>
    %cst_15 = arith.constant dense<0.000000e+00> : vector<16xf32>
    %26 = vector.multi_reduction <add>, %25, %cst_15 [1] : vector<16x10xf32> to vector<16xf32>
    %27 = vector.shape_cast %26 : vector<16xf32> to vector<16x1xf32>
    %28 = tpu.reciprocal %27 {approx = true} : vector<16x1xf32> -> vector<16x1xf32>
    %29 = vector.broadcast %28 : vector<16x1xf32> to vector<16x10xf32>
    %30 = arith.mulf %25, %29 : vector<16x10xf32>
    %31 = arith.truncf %30 : vector<16x10xf32> to vector<16x10xbf16>
    %c0_16 = arith.constant 0 : index
    %c0_17 = arith.constant 0 : index
    %32 = vector.load %arg5[%c0_16, %c0_17] : memref<10x128xbf16, #tpu.memory_space<vmem>>, vector<10x128xbf16>
    %cst_18 = arith.constant dense<0.000000e+00> : vector<16x128xf32>
    %33 = tpu.matmul %31, %32, %cst_18 {dimension_numbers = #tpu.dot_dimension_numbers<[1], [0], [0], [1], [0, 0, 1, 1], [], []>} : vector<16x10xbf16>, vector<10x128xbf16>, vector<16x128xf32> -> vector<16x128xf32>
    %34 = arith.addf %13, %33 : vector<16x128xf32>
    %35 = vector.extract_strided_slice %34 {offsets = [0, 10], sizes = [16, 50], strides = [1, 1]} : vector<16x128xf32> to vector<16x50xf32>
    %36 = vector.extract_strided_slice %34 {offsets = [0, 60], sizes = [16, 50], strides = [1, 1]} : vector<16x128xf32> to vector<16x50xf32>
    %37 = math.exp %36 : vector<16x50xf32>
    %38 = arith.mulf %37, %16 : vector<16x50xf32>
    %39 = arith.addf %35, %38 : vector<16x50xf32>
    %cst_19 = arith.constant 0.000000e+00 : f32
    %40 = vector.broadcast %cst_19 : f32 to vector<16x86xf32>
    %41 = tpu.concatenate %17, %30, %35, %37, %39, %40 in 1 : vector<16x10xf32>, vector<16x10xf32>, vector<16x50xf32>, vector<16x50xf32>, vector<16x50xf32>, vector<16x86xf32> -> vector<16x256xf32>
    %c0_20 = arith.constant 0 : index
    %c0_21 = arith.constant 0 : index
    %42 = vector.load %arg8[%c0_20, %c0_21] : memref<16x256xf32, #tpu.memory_space<vmem>>, vector<16x256xf32>
    tpu.vector_store %arg8[%c0_20, %c0_21], %41 {strides = array<i32>} : memref<16x256xf32, #tpu.memory_space<vmem>>, vector<16x256xf32>,
    return
  }
  func.func @transform_0(%arg0: i32) -> (i32, i32) {
    %c0_i32 = arith.constant 0 : i32
    %c0_i32_0 = arith.constant 0 : i32
    return %arg0, %c0_i32 : i32, i32
  }
  func.func @transform_1(%arg0: i32) -> (i32, i32) {
    %c0_i32 = arith.constant 0 : i32
    %c0_i32_0 = arith.constant 0 : i32
    %c0_i32_1 = arith.constant 0 : i32
    return %c0_i32, %c0_i32_0 : i32, i32
  }
  func.func @transform_2(%arg0: i32) -> (i32, i32) {
    %c0_i32 = arith.constant 0 : i32
    %c0_i32_0 = arith.constant 0 : i32
    %c0_i32_1 = arith.constant 0 : i32
    return %c0_i32, %c0_i32_0 : i32, i32
  }
  func.func @transform_3(%arg0: i32) -> (i32, i32) {
    %c0_i32 = arith.constant 0 : i32
    %c0_i32_0 = arith.constant 0 : i32
    %c0_i32_1 = arith.constant 0 : i32
    return %c0_i32, %c0_i32_0 : i32, i32
  }
  func.func @transform_4(%arg0: i32) -> (i32, i32) {
    %c0_i32 = arith.constant 0 : i32
    %c0_i32_0 = arith.constant 0 : i32
    %c0_i32_1 = arith.constant 0 : i32
    return %c0_i32, %c0_i32_0 : i32, i32
  }
  func.func @transform_5(%arg0: i32) -> (i32, i32) {
    %c0_i32 = arith.constant 0 : i32
    %c0_i32_0 = arith.constant 0 : i32
    %c0_i32_1 = arith.constant 0 : i32
    return %c0_i32, %c0_i32_0 : i32, i32
  }
  func.func @transform_6(%arg0: i32) -> (i32, i32) {
    %c0_i32 = arith.constant 0 : i32
    %c0_i32_0 = arith.constant 0 : i32
    return %arg0, %c0_i32 : i32, i32
  }
  func.func @transform_7(%arg0: i32) -> (i32, i32) {
    %c0_i32 = arith.constant 0 : i32
    %c0_i32_0 = arith.constant 0 : i32
    return %arg0, %c0_i32 : i32, i32
  }
}

</mosaic_0001>

<llo_original>
// kernel: tpu_custom_call.1
$region0: #{tpu_custom_call.1}
  #allocation0 [shape = 'u32[]', space=smem, size = 0x4, offset = 0x4, fixed_abs, tag = 'smem constant byte address 0x4 - core index']
  #allocation1 [shape = 'u32[144,128]{1,0:T(1,128)}', space=vmem, size = 0x12000, scoped, tag = 'internal scratch']
  %s0 = inlined_call_operand.hbm [shape: bf16[16,896], index: 0, kind: input, shape index: {}]
  %s1 = inlined_call_operand.hbm [shape: bf16[896,256], index: 1, kind: input, shape index: {}]
  %s2 = inlined_call_operand.vmem [shape: f32[1,256], index: 2, kind: input, shape index: {}]
  %s3 = inlined_call_operand.hbm [shape: bf16[256,128], index: 3, kind: input, shape index: {}]
  %s4 = inlined_call_operand.hbm [shape: bf16[10,128], index: 4, kind: input, shape index: {}]
  %s5 = inlined_call_operand.vmem [shape: f32[1,128], index: 5, kind: input, shape index: {}]
  %s6 = inlined_call_operand.vmem [shape: f32[16,128], index: 6, kind: input, shape index: {}]
  %s7 = inlined_call_operand.hbm [shape: f32[16,256], index: 7, kind: output, shape index: {}]
  %s8 = sld [smem:[#allocation0]]
  $region54: #{tpu_custom_call.1} parent=0
    _
  %s10 = ssub.s32 1, %s8
  %s11 = scalar_select 0, %s10, %s8
  $region1: #{tpu_custom_call.1} parent=0
    #allocation2 [shape = 'u8[28672]{0}', space=vmem, size = 0x7000, scoped, tag = 'input window, operand 0, single buffered']
    #allocation3 [shape = 's32[1]{0}', space=sflag, size = 0x4, scoped, tag = 'scoped memory for tpu_custom_call.1']
    #allocation4 [shape = 's32[1]{0}', space=sflag, size = 0x4, scoped, tag = 'scoped memory for tpu_custom_call.1']
    #allocation5 [shape = 'u8[458752]{0}', space=vmem, size = 0x70000, scoped, tag = 'input window, operand 1, single buffered']
    #allocation6 [shape = 's32[1]{0}', space=sflag, size = 0x4, scoped, tag = 'scoped memory for tpu_custom_call.1']
    #allocation7 [shape = 'u8[65536]{0}', space=vmem, size = 0x10000, scoped, tag = 'input window, operand 3, single buffered']
    #allocation8 [shape = 'u8[4096]{0}', space=vmem, size = 0x1000, scoped, tag = 'input window, operand 4, single buffered']
    #allocation9 [shape = 's32[1]{0}', space=sflag, size = 0x4, scoped, tag = 'scoped memory for tpu_custom_call.1']
    #allocation10 [shape = 'u8[16384]{0}', space=vmem, size = 0x4000, scoped, tag = 'output window, operand 0, single buffered']
    %12 = vsyncpa [#allocation3], 0
    %13 = vsyncpa [#allocation6], 0
    %14 = vsyncpa [#allocation9], 0
    %15 = vsyncpa [#allocation4], 0
    // Predicated region
    $region2: #{tpu_custom_call.1} parent=1 // pred_check
      _
    $region3: #{tpu_custom_call.1} parent=1 // pred_check_branch
      %17 = sbr.rel (0) target = $region5
    $region4: #{tpu_custom_call.1} parent=1 // pred_region
      %s19 = ssub.s32 896, 896
      %20 = vsyncadd [#allocation3], %s19
      %s21 = sshll.u32 [#allocation2], 4
      %s22 = int_to_ptr.vmem [resolvable:$true] %s21
      %27 = dma.hbm_to_vmem [thread:$0]  %s0, 896, %s22, [#allocation3], 448, 448, 28
    $region5: #{tpu_custom_call.1} parent=1 // pred_fallthru
      _
    // Predicated region
    $region6: #{tpu_custom_call.1} parent=1 // pred_check
      _
    $region7: #{tpu_custom_call.1} parent=1 // pred_check_branch
      %29 = sbr.rel (0) target = $region9
    $region8: #{tpu_custom_call.1} parent=1 // pred_region
      %s31 = ssub.s32 14336, 14336
      %32 = vsyncadd [#allocation6], %s31
      %s33 = sshll.u32 [#allocation5], 4
      %s34 = int_to_ptr.vmem [resolvable:$true] %s33
      %39 = dma.hbm_to_vmem [thread:$0]  %s1, 14336, %s34, [#allocation6], 128, 128, 8
    $region9: #{tpu_custom_call.1} parent=1 // pred_fallthru
      _
    // Predicated region
    $region10: #{tpu_custom_call.1} parent=1 // pred_check
      _
    $region11: #{tpu_custom_call.1} parent=1 // pred_check_branch
      %41 = sbr.rel (0) target = $region13
    $region12: #{tpu_custom_call.1} parent=1 // pred_region
      _
    $region13: #{tpu_custom_call.1} parent=1 // pred_fallthru
      _
    // Predicated region
    $region14: #{tpu_custom_call.1} parent=1 // pred_check
      _
    $region15: #{tpu_custom_call.1} parent=1 // pred_check_branch
      %43 = sbr.rel (0) target = $region17
    $region16: #{tpu_custom_call.1} parent=1 // pred_region
      %s45 = ssub.s32 2048, 2048
      %46 = vsyncadd [#allocation6], %s45
      %s47 = sshll.u32 [#allocation7], 4
      %s48 = int_to_ptr.vmem [resolvable:$true] %s47
      %53 = dma.hbm_to_vmem [thread:$0]  %s3, 2048, %s48, [#allocation6], 64, 64, 4
    $region17: #{tpu_custom_call.1} parent=1 // pred_fallthru
      _
    // Predicated region
    $region18: #{tpu_custom_call.1} parent=1 // pred_check
      _
    $region19: #{tpu_custom_call.1} parent=1 // pred_check_branch
      %55 = sbr.rel (0) target = $region21
    $region20: #{tpu_custom_call.1} parent=1 // pred_region
      %s57 = ssub.s32 128, 128
      %58 = vsyncadd [#allocation9], %s57
      %s59 = sshll.u32 [#allocation8], 4
      %s60 = int_to_ptr.vmem [resolvable:$true] %s59
      %65 = dma.hbm_to_vmem [thread:$0]  %s4, 128, %s60, [#allocation9], 64, 64, 4
    $region21: #{tpu_custom_call.1} parent=1 // pred_fallthru
      _
    // Predicated region
    $region22: #{tpu_custom_call.1} parent=1 // pred_check
      _
    $region23: #{tpu_custom_call.1} parent=1 // pred_check_branch
      %67 = sbr.rel (0) target = $region25
    $region24: #{tpu_custom_call.1} parent=1 // pred_region
      _
    $region25: #{tpu_custom_call.1} parent=1 // pred_fallthru
      _
    // Predicated region
    $region26: #{tpu_custom_call.1} parent=1 // pred_check
      _
    $region27: #{tpu_custom_call.1} parent=1 // pred_check_branch
      %69 = sbr.rel (0) target = $region29
    $region28: #{tpu_custom_call.1} parent=1 // pred_region
      _
    $region29: #{tpu_custom_call.1} parent=1 // pred_fallthru
      _
    // Predicated region
    $region30: #{tpu_custom_call.1} parent=1 // pred_check
      _
    $region31: #{tpu_custom_call.1} parent=1 // pred_check_branch
      %71 = sbr.rel (0) target = $region33
    $region32: #{tpu_custom_call.1} parent=1 // pred_region
      %72 = dma.done [#allocation3], 896
    $region33: #{tpu_custom_call.1} parent=1 // pred_fallthru
      _
    // Predicated region
    $region34: #{tpu_custom_call.1} parent=1 // pred_check
      _
    $region35: #{tpu_custom_call.1} parent=1 // pred_check_branch
      %74 = sbr.rel (0) target = $region37
    $region36: #{tpu_custom_call.1} parent=1 // pred_region
      %75 = dma.done [#allocation6], 14336
    $region37: #{tpu_custom_call.1} parent=1 // pred_fallthru
      _
    // Predicated region
    $region38: #{tpu_custom_call.1} parent=1 // pred_check
      _
    $region39: #{tpu_custom_call.1} parent=1 // pred_check_branch
      %77 = sbr.rel (0) target = $region41
    $region40: #{tpu_custom_call.1} parent=1 // pred_region
      %78 = dma.done [#allocation6], 2048
    $region41: #{tpu_custom_call.1} parent=1 // pred_fallthru
      _
    // Predicated region
    $region42: #{tpu_custom_call.1} parent=1 // pred_check
      _
    $region43: #{tpu_custom_call.1} parent=1 // pred_check_branch
      %80 = sbr.rel (0) target = $region45
    $region44: #{tpu_custom_call.1} parent=1 // pred_region
      %81 = dma.done [#allocation9], 128
    $region45: #{tpu_custom_call.1} parent=1 // pred_fallthru
      _
    %v83 = vld [vmem:[#allocation2] sm:$0xff]
    %v84 = vld [vmem:[#allocation2 + $0x8] sm:$0xff]
    %v85 = vld [vmem:[#allocation2 + $0x10] sm:$0xff]
    %v86 = vld [vmem:[#allocation2 + $0x18] sm:$0xf]
    %v87 = vld [vmem:[#allocation2 + $0x1c] sm:$0xff]
    %v88 = vld [vmem:[#allocation2 + $0x24] sm:$0xff]
    %v89 = vld [vmem:[#allocation2 + $0x2c] sm:$0xff]
    %v90 = vld [vmem:[#allocation2 + $0x34] sm:$0xf]
    %v91 = vld [vmem:[#allocation5] sm:$0xff]
    %v92 = vld [vmem:[#allocation5 + $0x8] sm:$0xff]
    %v93 = vld [vmem:[#allocation5 + $0x10] sm:$0xff]
    %v94 = vld [vmem:[#allocation5 + $0x18] sm:$0xff]
    %v95 = vld [vmem:[#allocation5 + $0x20] sm:$0xff]
    %v96 = vld [vmem:[#allocation5 + $0x28] sm:$0xff]
    %v97 = vld [vmem:[#allocation5 + $0x30] sm:$0xff]
    %v98 = vld [vmem:[#allocation5 + $0x38] sm:$0xff]
    %v99 = vld [vmem:[#allocation5 + $0x40] sm:$0xff]
    %v100 = vld [vmem:[#allocation5 + $0x48] sm:$0xff]
    %v101 = vld [vmem:[#allocation5 + $0x50] sm:$0xff]
    %v102 = vld [vmem:[#allocation5 + $0x58] sm:$0xff]
    %v103 = vld [vmem:[#allocation5 + $0x60] sm:$0xff]
    %v104 = vld [vmem:[#allocation5 + $0x68] sm:$0xff]
    %v105 = vld [vmem:[#allocation5 + $0x70] sm:$0xff]
    %v106 = vld [vmem:[#allocation5 + $0x78] sm:$0xff]
    %v107 = vld [vmem:[#allocation5 + $0x80] sm:$0xff]
    %v108 = vld [vmem:[#allocation5 + $0x88] sm:$0xff]
    %v109 = vld [vmem:[#allocation5 + $0x90] sm:$0xff]
    %v110 = vld [vmem:[#allocation5 + $0x98] sm:$0xff]
    %v111 = vld [vmem:[#allocation5 + $0xa0] sm:$0xff]
    %v112 = vld [vmem:[#allocation5 + $0xa8] sm:$0xff]
    %v113 = vld [vmem:[#allocation5 + $0xb0] sm:$0xff]
    %v114 = vld [vmem:[#allocation5 + $0xb8] sm:$0xff]
    %v115 = vld [vmem:[#allocation5 + $0xc0] sm:$0xff]
    %v116 = vld [vmem:[#allocation5 + $0xc8] sm:$0xff]
    %v117 = vld [vmem:[#allocation5 + $0xd0] sm:$0xff]
    %v118 = vld [vmem:[#allocation5 + $0xd8] sm:$0xff]
    %v119 = vld [vmem:[#allocation5 + $0xe0] sm:$0xff]
    %v120 = vld [vmem:[#allocation5 + $0xe8] sm:$0xff]
    %v121 = vld [vmem:[#allocation5 + $0xf0] sm:$0xff]
    %v122 = vld [vmem:[#allocation5 + $0xf8] sm:$0xff]
    %v123 = vld [vmem:[#allocation5 + $0x100] sm:$0xff]
    %v124 = vld [vmem:[#allocation5 + $0x108] sm:$0xff]
    %v125 = vld [vmem:[#allocation5 + $0x110] sm:$0xff]
    %v126 = vld [vmem:[#allocation5 + $0x118] sm:$0xff]
    %v127 = vld [vmem:[#allocation5 + $0x120] sm:$0xff]
    %v128 = vld [vmem:[#allocation5 + $0x128] sm:$0xff]
    %v129 = vld [vmem:[#allocation5 + $0x130] sm:$0xff]
    %v130 = vld [vmem:[#allocation5 + $0x138] sm:$0xff]
    %v131 = vld [vmem:[#allocation5 + $0x140] sm:$0xff]
    %v132 = vld [vmem:[#allocation5 + $0x148] sm:$0xff]
    %v133 = vld [vmem:[#allocation5 + $0x150] sm:$0xff]
    %v134 = vld [vmem:[#allocation5 + $0x158] sm:$0xff]
    %v135 = vld [vmem:[#allocation5 + $0x160] sm:$0xff]
    %v136 = vld [vmem:[#allocation5 + $0x168] sm:$0xff]
    %v137 = vld [vmem:[#allocation5 + $0x170] sm:$0xff]
    %v138 = vld [vmem:[#allocation5 + $0x178] sm:$0xff]
    %v139 = vld [vmem:[#allocation5 + $0x180] sm:$0xff]
    %v140 = vld [vmem:[#allocation5 + $0x188] sm:$0xff]
    %v141 = vld [vmem:[#allocation5 + $0x190] sm:$0xff]
    %v142 = vld [vmem:[#allocation5 + $0x198] sm:$0xff]
    %v143 = vld [vmem:[#allocation5 + $0x1a0] sm:$0xff]
    %v144 = vld [vmem:[#allocation5 + $0x1a8] sm:$0xff]
    %v145 = vld [vmem:[#allocation5 + $0x1b0] sm:$0xff]
    %v146 = vld [vmem:[#allocation5 + $0x1b8] sm:$0xff]
    %v147 = vld [vmem:[#allocation5 + $0x1c0] sm:$0xff]
    %v148 = vld [vmem:[#allocation5 + $0x1c8] sm:$0xff]
    %v149 = vld [vmem:[#allocation5 + $0x1d0] sm:$0xff]
    %v150 = vld [vmem:[#allocation5 + $0x1d8] sm:$0xff]
    %v151 = vld [vmem:[#allocation5 + $0x1e0] sm:$0xff]
    %v152 = vld [vmem:[#allocation5 + $0x1e8] sm:$0xff]
    %v153 = vld [vmem:[#allocation5 + $0x1f0] sm:$0xff]
    %v154 = vld [vmem:[#allocation5 + $0x1f8] sm:$0xff]
    %v155 = vld [vmem:[#allocation5 + $0x200] sm:$0xff]
    %v156 = vld [vmem:[#allocation5 + $0x208] sm:$0xff]
    %v157 = vld [vmem:[#allocation5 + $0x210] sm:$0xff]
    %v158 = vld [vmem:[#allocation5 + $0x218] sm:$0xff]
    %v159 = vld [vmem:[#allocation5 + $0x220] sm:$0xff]
    %v160 = vld [vmem:[#allocation5 + $0x228] sm:$0xff]
    %v161 = vld [vmem:[#allocation5 + $0x230] sm:$0xff]
    %v162 = vld [vmem:[#allocation5 + $0x238] sm:$0xff]
    %v163 = vld [vmem:[#allocation5 + $0x240] sm:$0xff]
    %v164 = vld [vmem:[#allocation5 + $0x248] sm:$0xff]
    %v165 = vld [vmem:[#allocation5 + $0x250] sm:$0xff]
    %v166 = vld [vmem:[#allocation5 + $0x258] sm:$0xff]
    %v167 = vld [vmem:[#allocation5 + $0x260] sm:$0xff]
    %v168 = vld [vmem:[#allocation5 + $0x268] sm:$0xff]
    %v169 = vld [vmem:[#allocation5 + $0x270] sm:$0xff]
    %v170 = vld [vmem:[#allocation5 + $0x278] sm:$0xff]
    %v171 = vld [vmem:[#allocation5 + $0x280] sm:$0xff]
    %v172 = vld [vmem:[#allocation5 + $0x288] sm:$0xff]
    %v173 = vld [vmem:[#allocation5 + $0x290] sm:$0xff]
    %v174 = vld [vmem:[#allocation5 + $0x298] sm:$0xff]
    %v175 = vld [vmem:[#allocation5 + $0x2a0] sm:$0xff]
    %v176 = vld [vmem:[#allocation5 + $0x2a8] sm:$0xff]
    %v177 = vld [vmem:[#allocation5 + $0x2b0] sm:$0xff]
    %v178 = vld [vmem:[#allocation5 + $0x2b8] sm:$0xff]
    %v179 = vld [vmem:[#allocation5 + $0x2c0] sm:$0xff]
    %v180 = vld [vmem:[#allocation5 + $0x2c8] sm:$0xff]
    %v181 = vld [vmem:[#allocation5 + $0x2d0] sm:$0xff]
    %v182 = vld [vmem:[#allocation5 + $0x2d8] sm:$0xff]
    %v183 = vld [vmem:[#allocation5 + $0x2e0] sm:$0xff]
    %v184 = vld [vmem:[#allocation5 + $0x2e8] sm:$0xff]
    %v185 = vld [vmem:[#allocation5 + $0x2f0] sm:$0xff]
    %v186 = vld [vmem:[#allocation5 + $0x2f8] sm:$0xff]
    %v187 = vld [vmem:[#allocation5 + $0x300] sm:$0xff]
    %v188 = vld [vmem:[#allocation5 + $0x308] sm:$0xff]
    %v189 = vld [vmem:[#allocation5 + $0x310] sm:$0xff]
    %v190 = vld [vmem:[#allocation5 + $0x318] sm:$0xff]
    %v191 = vld [vmem:[#allocation5 + $0x320] sm:$0xff]
    %v192 = vld [vmem:[#allocation5 + $0x328] sm:$0xff]
    %v193 = vld [vmem:[#allocation5 + $0x330] sm:$0xff]
    %v194 = vld [vmem:[#allocation5 + $0x338] sm:$0xff]
    %v195 = vld [vmem:[#allocation5 + $0x340] sm:$0xff]
    %v196 = vld [vmem:[#allocation5 + $0x348] sm:$0xff]
    %v197 = vld [vmem:[#allocation5 + $0x350] sm:$0xff]
    %v198 = vld [vmem:[#allocation5 + $0x358] sm:$0xff]
    %v199 = vld [vmem:[#allocation5 + $0x360] sm:$0xff]
    %v200 = vld [vmem:[#allocation5 + $0x368] sm:$0xff]
    %v201 = vld [vmem:[#allocation5 + $0x370] sm:$0xff]
    %v202 = vld [vmem:[#allocation5 + $0x378] sm:$0xff]
    %v203 = vld [vmem:[%s2] sm:$0x3]
    %v205 = vlaneseq
    %v206 = vshrl.u32 %v205, 7
    %v207 = vsub.s32 0, %v206
    %v208 = vrot.slane %v203, %v207
    %v209 = vlaneseq
    %v210 = vshrl.u32 %v209, 7
    %v211 = vsub.s32 1, %v210
    %v212 = vrot.slane %v203, %v211
    %v223 = vunpack.c.l.b16 %v83
    %v224 = vunpack.c.h.b16 %v83
    %v225 = vunpack.c.l.b16 %v84
    %v226 = vunpack.c.h.b16 %v84
    %v227 = vunpack.c.l.b16 %v85
    %v228 = vunpack.c.h.b16 %v85
    %v229 = vunpack.c.l.b16 %v86
    %v230 = vunpack.c.l.b16 %v87
    %v231 = vunpack.c.h.b16 %v87
    %v232 = vunpack.c.l.b16 %v88
    %v233 = vunpack.c.h.b16 %v88
    %v234 = vunpack.c.l.b16 %v89
    %v235 = vunpack.c.h.b16 %v89
    %v236 = vunpack.c.l.b16 %v90
    %v237 = vpack.c.b16 %v230, %v223
    %v238 = vpack.c.b16 %v231, %v224
    %v239 = vpack.c.b16 %v232, %v225
    %v240 = vpack.c.b16 %v233, %v226
    %v241 = vpack.c.b16 %v234, %v227
    %v242 = vpack.c.b16 %v235, %v228
    %v243 = vpack.c.b16 %v236, %v229
    %v363 = vunpack.c.l.b16 %v91
    %v364 = vunpack.c.h.b16 %v91
    %v365 = vunpack.c.l.b16 %v92
    %v366 = vunpack.c.h.b16 %v92
    %v367 = vunpack.c.l.b16 %v93
    %v368 = vunpack.c.h.b16 %v93
    %v369 = vunpack.c.l.b16 %v94
    %v370 = vunpack.c.h.b16 %v94
    %v371 = vunpack.c.l.b16 %v95
    %v372 = vunpack.c.h.b16 %v95
    %v373 = vunpack.c.l.b16 %v96
    %v374 = vunpack.c.h.b16 %v96
    %v375 = vunpack.c.l.b16 %v97
    %v376 = vunpack.c.h.b16 %v97
    %v377 = vunpack.c.l.b16 %v98
    %v378 = vunpack.c.h.b16 %v98
    %v379 = vunpack.c.l.b16 %v99
    %v380 = vunpack.c.h.b16 %v99
    %v381 = vunpack.c.l.b16 %v100
    %v382 = vunpack.c.h.b16 %v100
    %v383 = vunpack.c.l.b16 %v101
    %v384 = vunpack.c.h.b16 %v101
    %v385 = vunpack.c.l.b16 %v102
    %v386 = vunpack.c.h.b16 %v102
    %v387 = vunpack.c.l.b16 %v103
    %v388 = vunpack.c.h.b16 %v103
    %v389 = vunpack.c.l.b16 %v104
    %v390 = vunpack.c.h.b16 %v104
    %v391 = vunpack.c.l.b16 %v105
    %v392 = vunpack.c.h.b16 %v105
    %v393 = vunpack.c.l.b16 %v106
    %v394 = vunpack.c.h.b16 %v106
    %v395 = vunpack.c.l.b16 %v107
    %v396 = vunpack.c.h.b16 %v107
    %v397 = vunpack.c.l.b16 %v108
    %v398 = vunpack.c.h.b16 %v108
    %v399 = vunpack.c.l.b16 %v109
    %v400 = vunpack.c.h.b16 %v109
    %v401 = vunpack.c.l.b16 %v110
    %v402 = vunpack.c.h.b16 %v110
    %v403 = vunpack.c.l.b16 %v111
    %v404 = vunpack.c.h.b16 %v111
    %v405 = vunpack.c.l.b16 %v112
    %v406 = vunpack.c.h.b16 %v112
    %v407 = vunpack.c.l.b16 %v113
    %v408 = vunpack.c.h.b16 %v113
    %v409 = vunpack.c.l.b16 %v114
    %v410 = vunpack.c.h.b16 %v114
    %v411 = vunpack.c.l.b16 %v115
    %v412 = vunpack.c.h.b16 %v115
    %v413 = vunpack.c.l.b16 %v116
    %v414 = vunpack.c.h.b16 %v116
    %v415 = vunpack.c.l.b16 %v117
    %v416 = vunpack.c.h.b16 %v117
    %v417 = vunpack.c.l.b16 %v118
    %v418 = vunpack.c.h.b16 %v118
    %v419 = vunpack.c.l.b16 %v119
    %v420 = vunpack.c.h.b16 %v119
    %v421 = vunpack.c.l.b16 %v120
    %v422 = vunpack.c.h.b16 %v120
    %v423 = vunpack.c.l.b16 %v121
    %v424 = vunpack.c.h.b16 %v121
    %v425 = vunpack.c.l.b16 %v122
    %v426 = vunpack.c.h.b16 %v122
    %v427 = vunpack.c.l.b16 %v123
    %v428 = vunpack.c.h.b16 %v123
    %v429 = vunpack.c.l.b16 %v124
    %v430 = vunpack.c.h.b16 %v124
    %v431 = vunpack.c.l.b16 %v125
    %v432 = vunpack.c.h.b16 %v125
    %v433 = vunpack.c.l.b16 %v126
    %v434 = vunpack.c.h.b16 %v126
    %v435 = vunpack.c.l.b16 %v127
    %v436 = vunpack.c.h.b16 %v127
    %v437 = vunpack.c.l.b16 %v128
    %v438 = vunpack.c.h.b16 %v128
    %v439 = vunpack.c.l.b16 %v129
    %v440 = vunpack.c.h.b16 %v129
    %v441 = vunpack.c.l.b16 %v130
    %v442 = vunpack.c.h.b16 %v130
    %v443 = vunpack.c.l.b16 %v131
    %v444 = vunpack.c.h.b16 %v131
    %v445 = vunpack.c.l.b16 %v132
    %v446 = vunpack.c.h.b16 %v132
    %v447 = vunpack.c.l.b16 %v133
    %v448 = vunpack.c.h.b16 %v133
    %v449 = vunpack.c.l.b16 %v134
    %v450 = vunpack.c.h.b16 %v134
    %v451 = vunpack.c.l.b16 %v135
    %v452 = vunpack.c.h.b16 %v135
    %v453 = vunpack.c.l.b16 %v136
    %v454 = vunpack.c.h.b16 %v136
    %v455 = vunpack.c.l.b16 %v137
    %v456 = vunpack.c.h.b16 %v137
    %v457 = vunpack.c.l.b16 %v138
    %v458 = vunpack.c.h.b16 %v138
    %v459 = vunpack.c.l.b16 %v139
    %v460 = vunpack.c.h.b16 %v139
    %v461 = vunpack.c.l.b16 %v140
    %v462 = vunpack.c.h.b16 %v140
    %v463 = vunpack.c.l.b16 %v141
    %v464 = vunpack.c.h.b16 %v141
    %v465 = vunpack.c.l.b16 %v142
    %v466 = vunpack.c.h.b16 %v142
    %v467 = vunpack.c.l.b16 %v143
    %v468 = vunpack.c.h.b16 %v143
    %v469 = vunpack.c.l.b16 %v144
    %v470 = vunpack.c.h.b16 %v144
    %v471 = vunpack.c.l.b16 %v145
    %v472 = vunpack.c.h.b16 %v145
    %v473 = vunpack.c.l.b16 %v146
    %v474 = vunpack.c.h.b16 %v146
    %v475 = vunpack.c.l.b16 %v147
    %v476 = vunpack.c.h.b16 %v147
    %v477 = vunpack.c.l.b16 %v148
    %v478 = vunpack.c.h.b16 %v148
    %v479 = vunpack.c.l.b16 %v149
    %v480 = vunpack.c.h.b16 %v149
    %v481 = vunpack.c.l.b16 %v150
    %v482 = vunpack.c.h.b16 %v150
    %v483 = vunpack.c.l.b16 %v151
    %v484 = vunpack.c.h.b16 %v151
    %v485 = vunpack.c.l.b16 %v152
    %v486 = vunpack.c.h.b16 %v152
    %v487 = vunpack.c.l.b16 %v153
    %v488 = vunpack.c.h.b16 %v153
    %v489 = vunpack.c.l.b16 %v154
    %v490 = vunpack.c.h.b16 %v154
    %v491 = vunpack.c.l.b16 %v155
    %v492 = vunpack.c.h.b16 %v155
    %v493 = vunpack.c.l.b16 %v156
    %v494 = vunpack.c.h.b16 %v156
    %v495 = vunpack.c.l.b16 %v157
    %v496 = vunpack.c.h.b16 %v157
    %v497 = vunpack.c.l.b16 %v158
    %v498 = vunpack.c.h.b16 %v158
    %v499 = vunpack.c.l.b16 %v159
    %v500 = vunpack.c.h.b16 %v159
    %v501 = vunpack.c.l.b16 %v160
    %v502 = vunpack.c.h.b16 %v160
    %v503 = vunpack.c.l.b16 %v161
    %v504 = vunpack.c.h.b16 %v161
    %v505 = vunpack.c.l.b16 %v162
    %v506 = vunpack.c.h.b16 %v162
    %v507 = vunpack.c.l.b16 %v163
    %v508 = vunpack.c.h.b16 %v163
    %v509 = vunpack.c.l.b16 %v164
    %v510 = vunpack.c.h.b16 %v164
    %v511 = vunpack.c.l.b16 %v165
    %v512 = vunpack.c.h.b16 %v165
    %v513 = vunpack.c.l.b16 %v166
    %v514 = vunpack.c.h.b16 %v166
    %v515 = vunpack.c.l.b16 %v167
    %v516 = vunpack.c.h.b16 %v167
    %v517 = vunpack.c.l.b16 %v168
    %v518 = vunpack.c.h.b16 %v168
    %v519 = vunpack.c.l.b16 %v169
    %v520 = vunpack.c.h.b16 %v169
    %v521 = vunpack.c.l.b16 %v170
    %v522 = vunpack.c.h.b16 %v170
    %v523 = vunpack.c.l.b16 %v171
    %v524 = vunpack.c.h.b16 %v171
    %v525 = vunpack.c.l.b16 %v172
    %v526 = vunpack.c.h.b16 %v172
    %v527 = vunpack.c.l.b16 %v173
    %v528 = vunpack.c.h.b16 %v173
    %v529 = vunpack.c.l.b16 %v174
    %v530 = vunpack.c.h.b16 %v174
    %v531 = vunpack.c.l.b16 %v175
    %v532 = vunpack.c.h.b16 %v175
    %v533 = vunpack.c.l.b16 %v176
    %v534 = vunpack.c.h.b16 %v176
    %v535 = vunpack.c.l.b16 %v177
    %v536 = vunpack.c.h.b16 %v177
    %v537 = vunpack.c.l.b16 %v178
    %v538 = vunpack.c.h.b16 %v178
    %v539 = vunpack.c.l.b16 %v179
    %v540 = vunpack.c.h.b16 %v179
    %v541 = vunpack.c.l.b16 %v180
    %v542 = vunpack.c.h.b16 %v180
    %v543 = vunpack.c.l.b16 %v181
    %v544 = vunpack.c.h.b16 %v181
    %v545 = vunpack.c.l.b16 %v182
    %v546 = vunpack.c.h.b16 %v182
    %v547 = vunpack.c.l.b16 %v183
    %v548 = vunpack.c.h.b16 %v183
    %v549 = vunpack.c.l.b16 %v184
    %v550 = vunpack.c.h.b16 %v184
    %v551 = vunpack.c.l.b16 %v185
    %v552 = vunpack.c.h.b16 %v185
    %v553 = vunpack.c.l.b16 %v186
    %v554 = vunpack.c.h.b16 %v186
    %v555 = vunpack.c.l.b16 %v187
    %v556 = vunpack.c.h.b16 %v187
    %v557 = vunpack.c.l.b16 %v188
    %v558 = vunpack.c.h.b16 %v188
    %v559 = vunpack.c.l.b16 %v189
    %v560 = vunpack.c.h.b16 %v189
    %v561 = vunpack.c.l.b16 %v190
    %v562 = vunpack.c.h.b16 %v190
    %v563 = vunpack.c.l.b16 %v191
    %v564 = vunpack.c.h.b16 %v191
    %v565 = vunpack.c.l.b16 %v192
    %v566 = vunpack.c.h.b16 %v192
    %v567 = vunpack.c.l.b16 %v193
    %v568 = vunpack.c.h.b16 %v193
    %v569 = vunpack.c.l.b16 %v194
    %v570 = vunpack.c.h.b16 %v194
    %v571 = vunpack.c.l.b16 %v195
    %v572 = vunpack.c.h.b16 %v195
    %v573 = vunpack.c.l.b16 %v196
    %v574 = vunpack.c.h.b16 %v196
    %v575 = vunpack.c.l.b16 %v197
    %v576 = vunpack.c.h.b16 %v197
    %v577 = vunpack.c.l.b16 %v198
    %v578 = vunpack.c.h.b16 %v198
    %v579 = vunpack.c.l.b16 %v199
    %v580 = vunpack.c.h.b16 %v199
    %v581 = vunpack.c.l.b16 %v200
    %v582 = vunpack.c.h.b16 %v200
    %v583 = vunpack.c.l.b16 %v201
    %v584 = vunpack.c.h.b16 %v201
    %v585 = vunpack.c.l.b16 %v202
    %v586 = vunpack.c.h.b16 %v202
    %v587 = vpack.c.b16 %v365, %v363
    %v588 = vpack.c.b16 %v366, %v364
    %v589 = vpack.c.b16 %v369, %v367
    %v590 = vpack.c.b16 %v370, %v368
    %v591 = vpack.c.b16 %v373, %v371
    %v592 = vpack.c.b16 %v374, %v372
    %v593 = vpack.c.b16 %v377, %v375
    %v594 = vpack.c.b16 %v378, %v376
    %v595 = vpack.c.b16 %v381, %v379
    %v596 = vpack.c.b16 %v382, %v380
    %v597 = vpack.c.b16 %v385, %v383
    %v598 = vpack.c.b16 %v386, %v384
    %v599 = vpack.c.b16 %v389, %v387
    %v600 = vpack.c.b16 %v390, %v388
    %v601 = vpack.c.b16 %v393, %v391
    %v602 = vpack.c.b16 %v394, %v392
    %v603 = vpack.c.b16 %v397, %v395
    %v604 = vpack.c.b16 %v398, %v396
    %v605 = vpack.c.b16 %v401, %v399
    %v606 = vpack.c.b16 %v402, %v400
    %v607 = vpack.c.b16 %v405, %v403
    %v608 = vpack.c.b16 %v406, %v404
    %v609 = vpack.c.b16 %v409, %v407
    %v610 = vpack.c.b16 %v410, %v408
    %v611 = vpack.c.b16 %v413, %v411
    %v612 = vpack.c.b16 %v414, %v412
    %v613 = vpack.c.b16 %v417, %v415
    %v614 = vpack.c.b16 %v418, %v416
    %v615 = vpack.c.b16 %v421, %v419
    %v616 = vpack.c.b16 %v422, %v420
    %v617 = vpack.c.b16 %v425, %v423
    %v618 = vpack.c.b16 %v426, %v424
    %v619 = vpack.c.b16 %v429, %v427
    %v620 = vpack.c.b16 %v430, %v428
    %v621 = vpack.c.b16 %v433, %v431
    %v622 = vpack.c.b16 %v434, %v432
    %v623 = vpack.c.b16 %v437, %v435
    %v624 = vpack.c.b16 %v438, %v436
    %v625 = vpack.c.b16 %v441, %v439
    %v626 = vpack.c.b16 %v442, %v440
    %v627 = vpack.c.b16 %v445, %v443
    %v628 = vpack.c.b16 %v446, %v444
    %v629 = vpack.c.b16 %v449, %v447
    %v630 = vpack.c.b16 %v450, %v448
    %v631 = vpack.c.b16 %v453, %v451
    %v632 = vpack.c.b16 %v454, %v452
    %v633 = vpack.c.b16 %v457, %v455
    %v634 = vpack.c.b16 %v458, %v456
    %v635 = vpack.c.b16 %v461, %v459
    %v636 = vpack.c.b16 %v462, %v460
    %v637 = vpack.c.b16 %v465, %v463
    %v638 = vpack.c.b16 %v466, %v464
    %v639 = vpack.c.b16 %v469, %v467
    %v640 = vpack.c.b16 %v470, %v468
    %v641 = vpack.c.b16 %v473, %v471
    %v642 = vpack.c.b16 %v474, %v472
    %v643 = vpack.c.b16 %v477, %v475
    %v644 = vpack.c.b16 %v478, %v476
    %v645 = vpack.c.b16 %v481, %v479
    %v646 = vpack.c.b16 %v482, %v480
    %v647 = vpack.c.b16 %v485, %v483
    %v648 = vpack.c.b16 %v486, %v484
    %v649 = vpack.c.b16 %v489, %v487
    %v650 = vpack.c.b16 %v490, %v488
    %v651 = vpack.c.b16 %v493, %v491
    %v652 = vpack.c.b16 %v494, %v492
    %v653 = vpack.c.b16 %v497, %v495
    %v654 = vpack.c.b16 %v498, %v496
    %v655 = vpack.c.b16 %v501, %v499
    %v656 = vpack.c.b16 %v502, %v500
    %v657 = vpack.c.b16 %v505, %v503
    %v658 = vpack.c.b16 %v506, %v504
    %v659 = vpack.c.b16 %v509, %v507
    %v660 = vpack.c.b16 %v510, %v508
    %v661 = vpack.c.b16 %v513, %v511
    %v662 = vpack.c.b16 %v514, %v512
    %v663 = vpack.c.b16 %v517, %v515
    %v664 = vpack.c.b16 %v518, %v516
    %v665 = vpack.c.b16 %v521, %v519
    %v666 = vpack.c.b16 %v522, %v520
    %v667 = vpack.c.b16 %v525, %v523
    %v668 = vpack.c.b16 %v526, %v524
    %v669 = vpack.c.b16 %v529, %v527
    %v670 = vpack.c.b16 %v530, %v528
    %v671 = vpack.c.b16 %v533, %v531
    %v672 = vpack.c.b16 %v534, %v532
    %v673 = vpack.c.b16 %v537, %v535
    %v674 = vpack.c.b16 %v538, %v536
    %v675 = vpack.c.b16 %v541, %v539
    %v676 = vpack.c.b16 %v542, %v540
    %v677 = vpack.c.b16 %v545, %v543
    %v678 = vpack.c.b16 %v546, %v544
    %v679 = vpack.c.b16 %v549, %v547
    %v680 = vpack.c.b16 %v550, %v548
    %v681 = vpack.c.b16 %v553, %v551
    %v682 = vpack.c.b16 %v554, %v552
    %v683 = vpack.c.b16 %v557, %v555
    %v684 = vpack.c.b16 %v558, %v556
    %v685 = vpack.c.b16 %v561, %v559
    %v686 = vpack.c.b16 %v562, %v560
    %v687 = vpack.c.b16 %v565, %v563
    %v688 = vpack.c.b16 %v566, %v564
    %v689 = vpack.c.b16 %v569, %v567
    %v690 = vpack.c.b16 %v570, %v568
    %v691 = vpack.c.b16 %v573, %v571
    %v692 = vpack.c.b16 %v574, %v572
    %v693 = vpack.c.b16 %v577, %v575
    %v694 = vpack.c.b16 %v578, %v576
    %v695 = vpack.c.b16 %v581, %v579
    %v696 = vpack.c.b16 %v582, %v580
    %v697 = vpack.c.b16 %v585, %v583
    %v698 = vpack.c.b16 %v586, %v584
    %811 = vmatprep.subr.bf16.mxu0 %v588
    %812 = vmatpush1.bf16.msra.mxu0 %v587
    %813 = vmatprep.subr.bf16.mxu0 %v590
    %814 = vmatpush1.bf16.msra.mxu0 %v589
    %815 = vmatprep.subr.bf16.mxu0 %v592
    %816 = vmatpush1.bf16.msra.mxu0 %v591
    %817 = vmatprep.subr.bf16.mxu0 %v594
    %818 = vmatpush1.bf16.msra.mxu0 %v593
    %819 = vmatprep.subr.bf16.mxu0 %v596
    %820 = vmatpush1.bf16.msra.mxu0 %v595
    %821 = vmatprep.subr.bf16.mxu0 %v598
    %822 = vmatpush1.bf16.msra.mxu0 %v597
    %823 = vmatprep.subr.bf16.mxu0 %v600
    %824 = vmatpush1.bf16.msra.mxu0 %v599
    %825 = vmatprep.subr.bf16.mxu0 %v602
    %826 = vmatpush1.bf16.msra.mxu0 %v601
    %827 = vmatprep.subr.bf16.mxu0 %v604
    %828 = vmatpush1.bf16.msra.mxu0 %v603
    %829 = vmatprep.subr.bf16.mxu0 %v606
    %830 = vmatpush1.bf16.msra.mxu0 %v605
    %831 = vmatprep.subr.bf16.mxu0 %v608
    %832 = vmatpush1.bf16.msra.mxu0 %v607
    %833 = vmatprep.subr.bf16.mxu0 %v610
    %834 = vmatpush1.bf16.msra.mxu0 %v609
    %835 = vmatprep.subr.bf16.mxu0 %v612
    %836 = vmatpush1.bf16.msra.mxu0 %v611
    %837 = vmatprep.subr.bf16.mxu0 %v614
    %838 = vmatpush1.bf16.msra.mxu0 %v613
    %839 = vmatprep.subr.bf16.mxu0 %v616
    %840 = vmatpush1.bf16.msra.mxu0 %v615
    %841 = vmatprep.subr.bf16.mxu0 %v618
    %842 = vmatpush1.bf16.msra.mxu0 %v617
    %843 = vmatprep.mubr.bf16.mxu0 %v238
    %844 = vmatmul.mubr.bf16.gmra.mrb[0].mxu0 %v237
    %v845 = vpop.f32.mrb[0].mxu0
    %v846 = vadd.f32 %v208, %v845
    %v847 = vpop.f32.mrb[0].mxu0
    %v848 = vadd.f32 %v212, %v847
    %v849 = vpop.f32.mrb[0].mxu0
    %v850 = vadd.f32 %v208, %v849
    %v851 = vpop.f32.mrb[0].mxu0
    %v852 = vadd.f32 %v212, %v851
    %853 = vdwg.mxu0
    %854 = vmatprep.subr.bf16.mxu0 %v620
    %855 = vmatpush1.bf16.msra.mxu0 %v619
    %856 = vmatprep.subr.bf16.mxu0 %v622
    %857 = vmatpush1.bf16.msra.mxu0 %v621
    %858 = vmatprep.subr.bf16.mxu0 %v624
    %859 = vmatpush1.bf16.msra.mxu0 %v623
    %860 = vmatprep.subr.bf16.mxu0 %v626
    %861 = vmatpush1.bf16.msra.mxu0 %v625
    %862 = vmatprep.subr.bf16.mxu0 %v628
    %863 = vmatpush1.bf16.msra.mxu0 %v627
    %864 = vmatprep.subr.bf16.mxu0 %v630
    %865 = vmatpush1.bf16.msra.mxu0 %v629
    %866 = vmatprep.subr.bf16.mxu0 %v632
    %867 = vmatpush1.bf16.msra.mxu0 %v631
    %868 = vmatprep.subr.bf16.mxu0 %v634
    %869 = vmatpush1.bf16.msra.mxu0 %v633
    %870 = vmatprep.subr.bf16.mxu0 %v636
    %871 = vmatpush1.bf16.msra.mxu0 %v635
    %872 = vmatprep.subr.bf16.mxu0 %v638
    %873 = vmatpush1.bf16.msra.mxu0 %v637
    %874 = vmatprep.subr.bf16.mxu0 %v640
    %875 = vmatpush1.bf16.msra.mxu0 %v639
    %876 = vmatprep.subr.bf16.mxu0 %v642
    %877 = vmatpush1.bf16.msra.mxu0 %v641
    %878 = vmatprep.subr.bf16.mxu0 %v644
    %879 = vmatpush1.bf16.msra.mxu0 %v643
    %880 = vmatprep.subr.bf16.mxu0 %v646
    %881 = vmatpush1.bf16.msra.mxu0 %v645
    %882 = vmatprep.subr.bf16.mxu0 %v648
    %883 = vmatpush1.bf16.msra.mxu0 %v647
    %884 = vmatprep.subr.bf16.mxu0 %v650
    %885 = vmatpush1.bf16.msra.mxu0 %v649
    %886 = vmatprep.mubr.bf16.mxu0 %v240
    %887 = vmatmul.mubr.bf16.gmra.mrb[0].mxu0 %v239
    %v888 = vpop.f32.mrb[0].mxu0
    %v889 = vadd.f32 %v846, %v888
    %v890 = vpop.f32.mrb[0].mxu0
    %v891 = vadd.f32 %v848, %v890
    %v892 = vpop.f32.mrb[0].mxu0
    %v893 = vadd.f32 %v850, %v892
    %v894 = vpop.f32.mrb[0].mxu0
    %v895 = vadd.f32 %v852, %v894
    %896 = vdwg.mxu0
    %897 = vmatprep.subr.bf16.mxu0 %v652
    %898 = vmatpush1.bf16.msra.mxu0 %v651
    %899 = vmatprep.subr.bf16.mxu0 %v654
    %900 = vmatpush1.bf16.msra.mxu0 %v653
    %901 = vmatprep.subr.bf16.mxu0 %v656
    %902 = vmatpush1.bf16.msra.mxu0 %v655
    %903 = vmatprep.subr.bf16.mxu0 %v658
    %904 = vmatpush1.bf16.msra.mxu0 %v657
    %905 = vmatprep.subr.bf16.mxu0 %v660
    %906 = vmatpush1.bf16.msra.mxu0 %v659
    %907 = vmatprep.subr.bf16.mxu0 %v662
    %908 = vmatpush1.bf16.msra.mxu0 %v661
    %909 = vmatprep.subr.bf16.mxu0 %v664
    %910 = vmatpush1.bf16.msra.mxu0 %v663
    %911 = vmatprep.subr.bf16.mxu0 %v666
    %912 = vmatpush1.bf16.msra.mxu0 %v665
    %913 = vmatprep.subr.bf16.mxu0 %v668
    %914 = vmatpush1.bf16.msra.mxu0 %v667
    %915 = vmatprep.subr.bf16.mxu0 %v670
    %916 = vmatpush1.bf16.msra.mxu0 %v669
    %917 = vmatprep.subr.bf16.mxu0 %v672
    %918 = vmatpush1.bf16.msra.mxu0 %v671
    %919 = vmatprep.subr.bf16.mxu0 %v674
    %920 = vmatpush1.bf16.msra.mxu0 %v673
    %921 = vmatprep.subr.bf16.mxu0 %v676
    %922 = vmatpush1.bf16.msra.mxu0 %v675
    %923 = vmatprep.subr.bf16.mxu0 %v678
    %924 = vmatpush1.bf16.msra.mxu0 %v677
    %925 = vmatprep.subr.bf16.mxu0 %v680
    %926 = vmatpush1.bf16.msra.mxu0 %v679
    %927 = vmatprep.subr.bf16.mxu0 %v682
    %928 = vmatpush1.bf16.msra.mxu0 %v681
    %929 = vmatprep.mubr.bf16.mxu0 %v242
    %930 = vmatmul.mubr.bf16.gmra.mrb[0].mxu0 %v241
    %v931 = vpop.f32.mrb[0].mxu0
    %v932 = vadd.f32 %v889, %v931
    %v933 = vpop.f32.mrb[0].mxu0
    %v934 = vadd.f32 %v891, %v933
    %v935 = vpop.f32.mrb[0].mxu0
    %v936 = vadd.f32 %v893, %v935
    %v937 = vpop.f32.mrb[0].mxu0
    %v938 = vadd.f32 %v895, %v937
    %939 = vdwg.mxu0
    %940 = vmatprep.subr.bf16.mxu0 %v684
    %941 = vmatpush1.bf16.msra.mxu0 %v683
    %942 = vmatprep.subr.bf16.mxu0 %v686
    %943 = vmatpush1.bf16.msra.mxu0 %v685
    %944 = vmatprep.subr.bf16.mxu0 %v688
    %945 = vmatpush1.bf16.msra.mxu0 %v687
    %946 = vmatprep.subr.bf16.mxu0 %v690
    %947 = vmatpush1.bf16.msra.mxu0 %v689
    %948 = vmatprep.subr.bf16.mxu0 %v692
    %949 = vmatpush1.bf16.msra.mxu0 %v691
    %950 = vmatprep.subr.bf16.mxu0 %v694
    %951 = vmatpush1.bf16.msra.mxu0 %v693
    %952 = vmatprep.subr.bf16.mxu0 %v696
    %953 = vmatpush1.bf16.msra.mxu0 %v695
    %954 = vmatprep.subr.bf16.mxu0 %v698
    %955 = vmatpush1.bf16.msra.mxu0 %v697
    %956 = vmatprep.subr.bf16.mxu0 0
    %957 = vmatpush1.bf16.msra.mxu0 0
    %958 = vmatprep.subr.bf16.mxu0 0
    %959 = vmatpush1.bf16.msra.mxu0 0
    %960 = vmatprep.subr.bf16.mxu0 0
    %961 = vmatpush1.bf16.msra.mxu0 0
    %962 = vmatprep.subr.bf16.mxu0 0
    %963 = vmatpush1.bf16.msra.mxu0 0
    %964 = vmatprep.subr.bf16.mxu0 0
    %965 = vmatpush1.bf16.msra.mxu0 0
    %966 = vmatprep.subr.bf16.mxu0 0
    %967 = vmatpush1.bf16.msra.mxu0 0
    %968 = vmatprep.subr.bf16.mxu0 0
    %969 = vmatpush1.bf16.msra.mxu0 0
    %970 = vmatprep.subr.bf16.mxu0 0
    %971 = vmatpush1.bf16.msra.mxu0 0
    %972 = vmatprep.mubr.bf16.mxu0 0
    %973 = vmatmul.mubr.bf16.gmra.mrb[0].mxu0 %v243
    %v974 = vpop.f32.mrb[0].mxu0
    %v975 = vadd.f32 %v932, %v974
    %v976 = vpop.f32.mrb[0].mxu0
    %v977 = vadd.f32 %v934, %v976
    %v978 = vpop.f32.mrb[0].mxu0
    %v979 = vadd.f32 %v936, %v978
    %v980 = vpop.f32.mrb[0].mxu0
    %v981 = vadd.f32 %v938, %v980
    %982 = vdwg.mxu0
    %v983 = vmax.f32 %v975, 0.0
    %v984 = vmax.f32 %v977, 0.0
    %v985 = vmax.f32 %v979, 0.0
    %v986 = vmax.f32 %v981, 0.0
    %v987 = vpack.c.bf16 %v985, %v983
    %v988 = vpack.c.bf16 %v986, %v984
    %v989 = vld [vmem:[#allocation7] sm:$0xf]
    %v990 = vld [vmem:[#allocation7 + $0x4] sm:$0xf]
    %v991 = vld [vmem:[#allocation7 + $0x8] sm:$0xf]
    %v992 = vld [vmem:[#allocation7 + $0xc] sm:$0xf]
    %v993 = vld [vmem:[#allocation7 + $0x10] sm:$0xf]
    %v994 = vld [vmem:[#allocation7 + $0x14] sm:$0xf]
    %v995 = vld [vmem:[#allocation7 + $0x18] sm:$0xf]
    %v996 = vld [vmem:[#allocation7 + $0x1c] sm:$0xf]
    %v997 = vld [vmem:[#allocation7 + $0x20] sm:$0xf]
    %v998 = vld [vmem:[#allocation7 + $0x24] sm:$0xf]
    %v999 = vld [vmem:[#allocation7 + $0x28] sm:$0xf]
    %v1000 = vld [vmem:[#allocation7 + $0x2c] sm:$0xf]
    %v1001 = vld [vmem:[#allocation7 + $0x30] sm:$0xf]
    %v1002 = vld [vmem:[#allocation7 + $0x34] sm:$0xf]
    %v1003 = vld [vmem:[#allocation7 + $0x38] sm:$0xf]
    %v1004 = vld [vmem:[#allocation7 + $0x3c] sm:$0xf]
    %v1005 = vld [vmem:[#allocation7 + $0x40] sm:$0xf]
    %v1006 = vld [vmem:[#allocation7 + $0x44] sm:$0xf]
    %v1007 = vld [vmem:[#allocation7 + $0x48] sm:$0xf]
    %v1008 = vld [vmem:[#allocation7 + $0x4c] sm:$0xf]
    %v1009 = vld [vmem:[#allocation7 + $0x50] sm:$0xf]
    %v1010 = vld [vmem:[#allocation7 + $0x54] sm:$0xf]
    %v1011 = vld [vmem:[#allocation7 + $0x58] sm:$0xf]
    %v1012 = vld [vmem:[#allocation7 + $0x5c] sm:$0xf]
    %v1013 = vld [vmem:[#allocation7 + $0x60] sm:$0xf]
    %v1014 = vld [vmem:[#allocation7 + $0x64] sm:$0xf]
    %v1015 = vld [vmem:[#allocation7 + $0x68] sm:$0xf]
    %v1016 = vld [vmem:[#allocation7 + $0x6c] sm:$0xf]
    %v1017 = vld [vmem:[#allocation7 + $0x70] sm:$0xf]
    %v1018 = vld [vmem:[#allocation7 + $0x74] sm:$0xf]
    %v1019 = vld [vmem:[#allocation7 + $0x78] sm:$0xf]
    %v1020 = vld [vmem:[#allocation7 + $0x7c] sm:$0xf]
    %v1021 = vld [vmem:[%s5] sm:$0x1]
    %v1023 = vlaneseq
    %v1024 = vshrl.u32 %v1023, 7
    %v1025 = vsub.s32 0, %v1024
    %v1026 = vrot.slane %v1021, %v1025
    %v1060 = vunpack.c.l.b16 %v989
    %v1061 = vunpack.c.l.b16 %v990
    %v1062 = vunpack.c.l.b16 %v991
    %v1063 = vunpack.c.l.b16 %v992
    %v1064 = vunpack.c.l.b16 %v993
    %v1065 = vunpack.c.l.b16 %v994
    %v1066 = vunpack.c.l.b16 %v995
    %v1067 = vunpack.c.l.b16 %v996
    %v1068 = vunpack.c.l.b16 %v997
    %v1069 = vunpack.c.l.b16 %v998
    %v1070 = vunpack.c.l.b16 %v999
    %v1071 = vunpack.c.l.b16 %v1000
    %v1072 = vunpack.c.l.b16 %v1001
    %v1073 = vunpack.c.l.b16 %v1002
    %v1074 = vunpack.c.l.b16 %v1003
    %v1075 = vunpack.c.l.b16 %v1004
    %v1076 = vunpack.c.l.b16 %v1005
    %v1077 = vunpack.c.l.b16 %v1006
    %v1078 = vunpack.c.l.b16 %v1007
    %v1079 = vunpack.c.l.b16 %v1008
    %v1080 = vunpack.c.l.b16 %v1009
    %v1081 = vunpack.c.l.b16 %v1010
    %v1082 = vunpack.c.l.b16 %v1011
    %v1083 = vunpack.c.l.b16 %v1012
    %v1084 = vunpack.c.l.b16 %v1013
    %v1085 = vunpack.c.l.b16 %v1014
    %v1086 = vunpack.c.l.b16 %v1015
    %v1087 = vunpack.c.l.b16 %v1016
    %v1088 = vunpack.c.l.b16 %v1017
    %v1089 = vunpack.c.l.b16 %v1018
    %v1090 = vunpack.c.l.b16 %v1019
    %v1091 = vunpack.c.l.b16 %v1020
    %v1092 = vpack.c.b16 %v1061, %v1060
    %v1093 = vpack.c.b16 %v1063, %v1062
    %v1094 = vpack.c.b16 %v1065, %v1064
    %v1095 = vpack.c.b16 %v1067, %v1066
    %v1096 = vpack.c.b16 %v1069, %v1068
    %v1097 = vpack.c.b16 %v1071, %v1070
    %v1098 = vpack.c.b16 %v1073, %v1072
    %v1099 = vpack.c.b16 %v1075, %v1074
    %v1100 = vpack.c.b16 %v1077, %v1076
    %v1101 = vpack.c.b16 %v1079, %v1078
    %v1102 = vpack.c.b16 %v1081, %v1080
    %v1103 = vpack.c.b16 %v1083, %v1082
    %v1104 = vpack.c.b16 %v1085, %v1084
    %v1105 = vpack.c.b16 %v1087, %v1086
    %v1106 = vpack.c.b16 %v1089, %v1088
    %v1107 = vpack.c.b16 %v1091, %v1090
    %1124 = vmatprep.subr.bf16.mxu0 0
    %1125 = vmatpush1.bf16.msra.mxu0 %v1092
    %1126 = vmatprep.subr.bf16.mxu0 0
    %1127 = vmatpush1.bf16.msra.mxu0 %v1093
    %1128 = vmatprep.subr.bf16.mxu0 0
    %1129 = vmatpush1.bf16.msra.mxu0 %v1094
    %1130 = vmatprep.subr.bf16.mxu0 0
    %1131 = vmatpush1.bf16.msra.mxu0 %v1095
    %1132 = vmatprep.subr.bf16.mxu0 0
    %1133 = vmatpush1.bf16.msra.mxu0 %v1096
    %1134 = vmatprep.subr.bf16.mxu0 0
    %1135 = vmatpush1.bf16.msra.mxu0 %v1097
    %1136 = vmatprep.subr.bf16.mxu0 0
    %1137 = vmatpush1.bf16.msra.mxu0 %v1098
    %1138 = vmatprep.subr.bf16.mxu0 0
    %1139 = vmatpush1.bf16.msra.mxu0 %v1099
    %1140 = vmatprep.subr.bf16.mxu0 0
    %1141 = vmatpush1.bf16.msra.mxu0 %v1100
    %1142 = vmatprep.subr.bf16.mxu0 0
    %1143 = vmatpush1.bf16.msra.mxu0 %v1101
    %1144 = vmatprep.subr.bf16.mxu0 0
    %1145 = vmatpush1.bf16.msra.mxu0 %v1102
    %1146 = vmatprep.subr.bf16.mxu0 0
    %1147 = vmatpush1.bf16.msra.mxu0 %v1103
    %1148 = vmatprep.subr.bf16.mxu0 0
    %1149 = vmatpush1.bf16.msra.mxu0 %v1104
    %1150 = vmatprep.subr.bf16.mxu0 0
    %1151 = vmatpush1.bf16.msra.mxu0 %v1105
    %1152 = vmatprep.subr.bf16.mxu0 0
    %1153 = vmatpush1.bf16.msra.mxu0 %v1106
    %1154 = vmatprep.subr.bf16.mxu0 0
    %1155 = vmatpush1.bf16.msra.mxu0 %v1107
    %1156 = vmatprep.mubr.bf16.mxu0 %v988
    %1157 = vmatmul.mubr.bf16.gmra.mrb[0].mxu0 %v987
    %v1158 = vpop.f32.mrb[0].mxu0
    %v1159 = vadd.f32 %v1026, %v1158
    %v1160 = vpop.f32.mrb[0].mxu0
    %v1161 = vpop.f32.mrb[0].mxu0
    %v1162 = vadd.f32 %v1026, %v1161
    %v1163 = vpop.f32.mrb[0].mxu0
    %1164 = vdwg.mxu0
    %v1165 = vld [vmem:[%s6] sm:$0xff]
    %v1166 = vld [vmem:[%s6 + $0x8] sm:$0xff]
    %v1167 = vadd.f32 %v1159, %v1165
    %v1168 = vadd.f32 %v1162, %v1166
    %v1169 = vmul.f32 %v1167, 1.5151515
    %v1170 = vmul.f32 %v1168, 1.5151515
    %vm1171 = vcmask 80896
    %v1172 = vsel %vm1171, %v1169, -inf
    %1173 = vmax.xlane.f32.xlu0 %v1172
    %v1174 = vpop.xlane.xlu0 %1173
    %v1175 = vsel %vm1171, %v1170, -inf
    %1176 = vmax.xlane.f32.xlu0 %v1175
    %v1177 = vpop.xlane.xlu0 %1176
    %v1178 = vsub.f32 %v1169, %v1174
    %v1179 = vsub.f32 %v1170, %v1177
    %v1180 = vmul.f32 %v1178, 1.442695
    %v1181 = vpow.pop %v1180
    %v1182 = vmul.f32 %v1179, 1.442695
    %v1183 = vpow.pop %v1182
    %v1184 = vsel %vm1171, %v1181, 0.0
    %1185 = vadd.xlane.f32.xlu0 %v1184
    %v1186 = vpop.xlane.xlu0 %1185
    %v1187 = vsel %vm1171, %v1183, 0.0
    %1188 = vadd.xlane.f32.xlu0 %v1187
    %v1189 = vpop.xlane.xlu0 %1188
    %v1190 = vrcp.pop %v1186
    %v1191 = vrcp.pop %v1189
    %v1192 = vmul.f32 %v1181, %v1190
    %v1193 = vmul.f32 %v1183, %v1191
    %v1194 = vpack.c.bf16 %v1193, %v1192
    %v1195 = vld [vmem:[#allocation8] sm:$0xf]
    %v1196 = vld [vmem:[#allocation8 + $0x4] sm:$0x1]
    %v1199 = vunpack.c.l.b16 %v1195
    %v1200 = vunpack.c.l.b16 %v1196
    %v1201 = vpack.c.b16 %v1200, %v1199
    %v1203 = vsel %vm1171, %v1194, 0
    %vm1205 = vcmask 1044480
    %v1207 = vsel %vm1205, %v1201, 0
    %1209 = vmatprep.subr.bf16.mxu0 0
    %1210 = vmatpush1.bf16.msra.mxu0 %v1207
    %1211 = vmatprep.subr.bf16.mxu0 0
    %1212 = vmatpush1.bf16.msra.mxu0 0
    %1213 = vmatprep.subr.bf16.mxu0 0
    %1214 = vmatpush1.bf16.msra.mxu0 0
    %1215 = vmatprep.subr.bf16.mxu0 0
    %1216 = vmatpush1.bf16.msra.mxu0 0
    %1217 = vmatprep.subr.bf16.mxu0 0
    %1218 = vmatpush1.bf16.msra.mxu0 0
    %1219 = vmatprep.subr.bf16.mxu0 0
    %1220 = vmatpush1.bf16.msra.mxu0 0
    %1221 = vmatprep.subr.bf16.mxu0 0
    %1222 = vmatpush1.bf16.msra.mxu0 0
    %1223 = vmatprep.subr.bf16.mxu0 0
    %1224 = vmatpush1.bf16.msra.mxu0 0
    %1225 = vmatprep.subr.bf16.mxu0 0
    %1226 = vmatpush1.bf16.msra.mxu0 0
    %1227 = vmatprep.subr.bf16.mxu0 0
    %1228 = vmatpush1.bf16.msra.mxu0 0
    %1229 = vmatprep.subr.bf16.mxu0 0
    %1230 = vmatpush1.bf16.msra.mxu0 0
    %1231 = vmatprep.subr.bf16.mxu0 0
    %1232 = vmatpush1.bf16.msra.mxu0 0
    %1233 = vmatprep.subr.bf16.mxu0 0
    %1234 = vmatpush1.bf16.msra.mxu0 0
    %1235 = vmatprep.subr.bf16.mxu0 0
    %1236 = vmatpush1.bf16.msra.mxu0 0
    %1237 = vmatprep.subr.bf16.mxu0 0
    %1238 = vmatpush1.bf16.msra.mxu0 0
    %1239 = vmatprep.subr.bf16.mxu0 0
    %1240 = vmatpush1.bf16.msra.mxu0 0
    %1241 = vmatprep.mubr.bf16.mxu0 0
    %1242 = vmatmul.mubr.bf16.gmra.mrb[0].mxu0 %v1203
    %v1243 = vpop.f32.mrb[0].mxu0
    %v1244 = vadd.f32 0.0, %v1243
    %v1245 = vpop.f32.mrb[0].mxu0
    %v1246 = vpop.f32.mrb[0].mxu0
    %v1247 = vadd.f32 0.0, %v1246
    %v1248 = vpop.f32.mrb[0].mxu0
    %1249 = vdwg.mxu0
    %v1250 = vadd.f32 %v1159, %v1244
    %v1251 = vadd.f32 %v1162, %v1247
    %v1252 = vmul.f32 %v1250, 1.442695
    %v1253 = vpow.pop %v1252
    %v1254 = vmul.f32 %v1251, 1.442695
    %v1255 = vpow.pop %v1254
    %1258 = vrot.lane.b32.xlu0 %v1165, 50
    %v1259 = vpop.permute.xlu0 %1258
    %1260 = vrot.lane.b32.xlu0 %v1166, 50
    %v1261 = vpop.permute.xlu0 %1260
    %v1264 = vmul.f32 %v1253, %v1259
    %v1265 = vmul.f32 %v1255, %v1261
    %1268 = vrot.lane.b32.xlu0 %v1264, 78
    %v1269 = vpop.permute.xlu0 %1268
    %1270 = vrot.lane.b32.xlu0 %v1265, 78
    %v1271 = vpop.permute.xlu0 %1270
    %v1274 = vadd.f32 %v1250, %v1269
    %v1275 = vadd.f32 %v1251, %v1271
    %1278 = vrot.lane.b32.xlu0 %v1192, 10
    %v1279 = vpop.permute.xlu0 %1278
    %1280 = vrot.lane.b32.xlu0 %v1193, 10
    %v1281 = vpop.permute.xlu0 %1280
    %1286 = vrot.lane.b32.xlu0 %v1250, 10
    %v1287 = vpop.permute.xlu0 %1286
    %1288 = vrot.lane.b32.xlu0 %v1251, 10
    %v1289 = vpop.permute.xlu0 %1288
    %1294 = vrot.lane.b32.xlu0 %v1253, 10
    %v1295 = vpop.permute.xlu0 %1294
    %1296 = vrot.lane.b32.xlu0 %v1255, 10
    %v1297 = vpop.permute.xlu0 %1296
    %1302 = vrot.lane.b32.xlu0 %v1274, 110
    %v1303 = vpop.permute.xlu0 %1302
    %1304 = vrot.lane.b32.xlu0 %v1275, 110
    %v1305 = vpop.permute.xlu0 %1304
    %v1308 = vsel %vm1171, %v1159, %v1279
    %v1309 = vsel %vm1171, %v1162, %v1281
    %vm1310 = vcmask 162816
    %v1311 = vsel %vm1310, %v1308, %v1287
    %v1312 = vsel %vm1310, %v1309, %v1289
    %vm1313 = vcmask 572416
    %v1314 = vsel %vm1313, %v1311, %v1295
    %v1315 = vsel %vm1313, %v1312, %v1297
    %vm1316 = vcmask 982016
    %v1317 = vsel %vm1316, %v1314, %v1303
    %v1318 = vsel %vm1316, %v1315, %v1305
    %vm1319 = vcmask 343040
    %v1320 = vsel %vm1319, %v1303, 0.0
    %v1321 = vsel %vm1319, %v1305, 0.0
    %1322 = vst [vmem:[#allocation10] sm:$0xff] %v1317
    %1323 = vst [vmem:[#allocation10 + $0x8] sm:$0xff] %v1320
    %1324 = vst [vmem:[#allocation10 + $0x10] sm:$0xff] %v1318
    %1325 = vst [vmem:[#allocation10 + $0x18] sm:$0xff] %v1321
    // Predicated region
    $region46: #{tpu_custom_call.1} parent=1 // pred_check
      _
    $region47: #{tpu_custom_call.1} parent=1 // pred_check_branch
      %1327 = sbr.rel (0) target = $region49
    $region48: #{tpu_custom_call.1} parent=1 // pred_region
      %s1329 = ssub.s32 512, 512
      %1330 = vsyncadd [#allocation4], %s1329
      %s1331 = sshll.u32 [#allocation10], 4
      %s1332 = int_to_ptr.vmem [resolvable:$true] %s1331
      %1337 = dma.vmem_to_hbm [thread:$0]  %s1332, 512, %s7, [#allocation4], 256, 256, 16
    $region49: #{tpu_custom_call.1} parent=1 // pred_fallthru
      _
    // Predicated region
    $region50: #{tpu_custom_call.1} parent=1 // pred_check
      _
    $region51: #{tpu_custom_call.1} parent=1 // pred_check_branch
      %1339 = sbr.rel (0) target = $region53
    $region52: #{tpu_custom_call.1} parent=1 // pred_region
      %1340 = dma.done [#allocation4], 512
    $region53: #{tpu_custom_call.1} parent=1 // pred_fallthru
      _
    %1341 = vsyncpa [#allocation3], 1
    %1342 = vsyncpa [#allocation6], 1
    %1343 = vsyncpa [#allocation9], 1
    %1344 = vsyncpa [#allocation4], 1

</llo_original>
